<compile_context>
chip_gen: v5e
topology: v5e:2x2
jax: 0.10.0
libtpu: 0.0.40
codegen_flags: <defaults>
</compile_context>

<pallas_src>
import math

import numpy as np
import jax
import jax.numpy as jnp
from jax.experimental import pallas as pl
from jax.experimental.pallas import tpu as pltpu


_LANE = 128      # TPU lane width: fold target for both image axes.


def _block_diag(w: np.ndarray, reps: int) -> np.ndarray:
    """blockdiag(w, ..., w) with `reps` copies (float32, host side)."""
    n = w.shape[0]
    out = np.zeros((reps * n, reps * n), dtype=np.float32)
    for t in range(reps):
        out[t * n:(t + 1) * n, t * n:(t + 1) * n] = w
    return out


def _fft2_kernel_fused(x_ref, wl_ref, br2_ref, yr_ref, yi_ref):
    """v6e/v7x path: fused left matmul + one 4-product right matmul per chunk.

    x_ref   : (R, TB*C)  real input, TB super-images side by side on lanes
    wl_ref  : (2R, R)    [Re ; Im] block-diag left DFT matrix (scale folded in)
    br2_ref : (C, 2C)    [Re | Im] block-diag right DFT matrix
    yr/yi   : (R, TB*C)  planar real / imag outputs (lane-dense stores)
    """
    x = x_ref[...]
    wl = wl_ref[...]
    br2 = br2_ref[...]
    R = wl.shape[1]
    C = br2.shape[0]

    # left (along-M) transform: one matmul, stationary x tiles loaded once
    lrli = jnp.dot(wl, x, preferred_element_type=jnp.float32)      # (2R, TB*C)

    n_chunks = x.shape[1] // C                                     # == TB
    for t in range(n_chunks):                                      # unrolled
        sl = slice(t * C, (t + 1) * C)
        # (2R, C) @ (C, 2C) -> (2R, 2C): all four real/imag products at once
        p = jnp.dot(lrli[:, sl], br2, preferred_element_type=jnp.float32)
        yr_ref[:, sl] = p[:R, :C] - p[R:, C:]
        yi_ref[:, sl] = p[:R, C:] + p[R:, :C]


def _fft2_kernel_karatsuba(x_ref, wl_ref, brx_ref, yr_ref, yi_ref):
    """v2-v5 path (128x128 MXU): fused left matmul + 3-multiply Karatsuba.

    brx_ref : (C, 3C)  [Re | Im | Re+Im] block-diag right DFT matrices
    """
    x = x_ref[...]
    wl = wl_ref[...]
    brx = brx_ref[...]
    R = wl.shape[1]
    C = brx.shape[0]

    lrli = jnp.dot(wl, x, preferred_element_type=jnp.float32)      # (2R, TB*C)
    lr = lrli[:R]
    li = lrli[R:]
    ls = lr + li                                                   # VPU add

    brr = brx[:, :C]
    bri = brx[:, C:2 * C]
    brs = brx[:, 2 * C:]

    n_chunks = x.shape[1] // C
    for t in range(n_chunks):
        sl = slice(t * C, (t + 1) * C)
        t1 = jnp.dot(lr[:, sl], brr, preferred_element_type=jnp.float32)
        t2 = jnp.dot(li[:, sl], bri, preferred_element_type=jnp.float32)
        t3 = jnp.dot(ls[:, sl], brs, preferred_element_type=jnp.float32)
        yr_ref[:, sl] = t1 - t2
        yi_ref[:, sl] = t3 - t1 - t2


def _chip_traits():
    """Returns (use_fused_right_transform, two_tensorcores, vmem_capacity)."""
    try:
        kind = jax.devices()[0].device_kind.lower()
    except Exception:
        kind = ""
    older = any(s in kind for s in ("v2", "v3", "v4", "v5"))   # 128x128 MXU
    use_fused = not older                                      # v6e/v7x/unknown
    two_cores = any(s in kind for s in ("v4", "v5p", "7"))     # megacore parts
    try:
        vmem_cap = int(pltpu.get_tpu_info().vmem_capacity_bytes)
    except Exception:
        vmem_cap = 64 * 1024 * 1024                            # v7x-sized
    return use_fused, two_cores, vmem_cap


def _build_call(kernel, R, C, wl_shape, br_shape, TB, Gpad, vmem_limit):
    grid = (Gpad // TB,)
    data_spec = pl.BlockSpec((R, TB * C), lambda g: (0, g))
    # Grid-invariant constants: block index never changes, so the pipeline
    # does not re-DMA them per step (Buffered(1) would only shave one VMEM copy).
    wl_spec = pl.BlockSpec(tuple(wl_shape), lambda g: (0, 0))
    br_spec = pl.BlockSpec(tuple(br_shape), lambda g: (0, 0))
    out_specs = [pl.BlockSpec((R, TB * C), lambda g: (0, g)),
                 pl.BlockSpec((R, TB * C), lambda g: (0, g))]
    out_shape = (jax.ShapeDtypeStruct((R, Gpad * C), jnp.float32),
                 jax.ShapeDtypeStruct((R, Gpad * C), jnp.float32))
    return pl.pallas_call(
        kernel,
        out_shape=out_shape,
        grid_spec=pltpu.PrefetchScalarGridSpec(
            num_scalar_prefetch=0,
            grid=grid,
            in_specs=[data_spec, wl_spec, br_spec],
            out_specs=out_specs,
        ),
        compiler_params=pltpu.CompilerParams(
            dimension_semantics=("parallel",),   # batch axis; both TCs on v7x
            vmem_limit_bytes=int(vmem_limit),
        ),
    )


def fft_layer_forward(x, isInv: bool = False):
    """Pallas implementation of FFT_Layer.forward.

    x : real array of shape (B, C, M, N) with M == N.
    Returns float32 array of shape (B, C, M, N, 2)  ([...,0]=real, [...,1]=imag).
    """
    B, Ch, M, N = x.shape
    assert M == N, "FFT_Layer asserts M_in == N_in"
    BC = B * Ch
    x_flat = jnp.asarray(x, jnp.float32).reshape(BC, M, N)

    # ---- fold factors: pack images into (up to) 128x128 super-images -------
    k = _LANE // N if (N < _LANE and _LANE % N == 0) else 1    # lane fold
    r = _LANE // M if (M < _LANE and _LANE % M == 0) else 1    # sublane fold
    C = k * N
    R = r * M
    per_super = r * k

    # ---- DFT matrices (host precomputed; inverse scale folded into wl) -----
    u = np.arange(N)
    ang = 2.0 * np.pi * np.outer(u, u) / N
    sgn = 1.0 if isInv else -1.0
    wr = np.cos(sgn * ang).astype(np.float32)
    wi = np.sin(sgn * ang).astype(np.float32)
    scale = np.float32(1.0 / (M * N)) if isInv else np.float32(1.0)

    use_fused, two_cores, vmem_cap = _chip_traits()

    wl = np.concatenate([_block_diag(wr * scale, r),
                         _block_diag(wi * scale, r)], axis=0)        # (2R, R)
    if use_fused:
        kernel = _fft2_kernel_fused
        br = np.concatenate([_block_diag(wr, k),
                             _block_diag(wi, k)], axis=1)            # (C, 2C)
    else:
        kernel = _fft2_kernel_karatsuba
        br = np.concatenate([_block_diag(wr, k),
                             _block_diag(wi, k),
                             _block_diag(wr + wi, k)], axis=1)       # (C, 3C)
    wl_j = jnp.asarray(wl)
    br_j = jnp.asarray(br)

    # ---- choose TB (super-images per grid step) from the VMEM budget -------
    vmem_limit = min(int(0.7 * vmem_cap), 100 * 1024 * 1024)
    tb_max = 24 if vmem_cap <= 64 * 1024 * 1024 else 32      # v7x vs v5e/v6e
    const_bytes = (wl.size + br.size) * 4
    per_tb_bytes = 10 * R * C * 4   # in + 2 out (double-buffered) + lrli/ls live
    tb_budget = max(1, (vmem_limit - 2 * const_bytes) // per_tb_bytes)
    TB = int(max(1, min(tb_max, tb_budget)))

    G = -(-BC // per_super)                                  # ceil(BC/per_super)
    TB = max(1, min(TB, G))

    # lane-dense blocks: TB*C must be a multiple of 128 lanes (odd-N fix);
    # a single full-width block is also fine and falls out of steps == 1.
    lane_step = _LANE // math.gcd(C, _LANE)
    if lane_step > 1:
        TB = max(lane_step, (TB // lane_step) * lane_step)

    steps = -(-G // TB)
    # keep the grid-step count even on 2-TensorCore chips so ("parallel",)
    # actually splits work across both cores
    if two_cores and steps > 1 and steps % 2 == 1:
        steps += 1
    Gpad = steps * TB
    total = Gpad * per_super
    if total != BC:
        x_flat = jnp.concatenate(
            [x_flat, jnp.zeros((total - BC, M, N), jnp.float32)], axis=0)

    # fold: (Gpad, r, k, M, N) -> (r, M, Gpad, k, N) -> (R, Gpad*C)
    xp = (x_flat.reshape(Gpad, r, k, M, N)
                .transpose(1, 3, 0, 2, 4)
                .reshape(R, Gpad * C))

    call = _build_call(kernel, R, C, wl.shape, br.shape, TB, Gpad, vmem_limit)
    yr, yi = call(xp, wl_j, br_j)

    # ---- unfold real / imag separately (lane-dense, innermost dim N), then
    #      stack the size-2 real/imag axis as the very last op ---------------
    def unfold(y):
        return (y.reshape(r, M, Gpad, k, N)
                 .transpose(2, 0, 3, 1, 4)
                 .reshape(total, M, N)[:BC]
                 .reshape(B, Ch, M, N))

    return jnp.stack([unfold(yr), unfold(yi)], axis=-1)


if __name__ == "__main__":
    key = jax.random.PRNGKey(0)
    B, Ch, M, N = 2, 4, 16, 16
    x = jax.random.normal(key, (B, Ch, M, N), dtype=jnp.float32)

    # forward FFT
    out = jax.block_until_ready(fft_layer_forward(x, isInv=False))
    assert out.shape == (B, Ch, M, N, 2) and out.dtype == jnp.float32

    ref = jnp.fft.fftn(x.astype(jnp.complex64), axes=(-2, -1))
    ref_ri = jnp.stack([jnp.real(ref), jnp.imag(ref)], axis=-1)
    np.testing.assert_allclose(np.asarray(out), np.asarray(ref_ri),
                               rtol=1e-3, atol=1e-2)

    # inverse FFT path (old torch.ifft normalisation = 1/(M*N))
    out_inv = jax.block_until_ready(fft_layer_forward(x, isInv=True))
    ref_inv = jnp.fft.ifftn(x.astype(jnp.complex64), axes=(-2, -1))
    ref_inv_ri = jnp.stack([jnp.real(ref_inv), jnp.imag(ref_inv)], axis=-1)
    np.testing.assert_allclose(np.asarray(out_inv), np.asarray(ref_inv_ri),
                               rtol=1e-3, atol=1e-2)

    print("KERNEL_OK")
</pallas_src>

<mosaic_0001>
module attributes {stable_mosaic.version = 11 : i64} {
  func.func @_fft2_kernel_fused(%arg0: i32, %arg1: memref<128x128xf32, #tpu.memory_space<vmem>>, %arg2: memref<256x128xf32, #tpu.memory_space<vmem>>, %arg3: memref<128x256xf32, #tpu.memory_space<vmem>>, %arg4: memref<128x128xf32, #tpu.memory_space<vmem>>, %arg5: memref<128x128xf32, #tpu.memory_space<vmem>>) attributes {dimension_semantics = [#tpu.dimension_semantics<parallel>], iteration_bounds = array<i64: 1>, scalar_prefetch = 0 : i64, scratch_operands = 0 : i64, tpu.core_type = #tpu.core_type<tc>, window_params = [{transform_indices = @transform_0, window_bounds = array<i64: 128, 128>}, {pipeline_mode = #tpu.pipeline_mode<synchronous>, transform_indices = @transform_1, window_bounds = array<i64: 256, 128>}, {pipeline_mode = #tpu.pipeline_mode<synchronous>, transform_indices = @transform_2, window_bounds = array<i64: 128, 256>}, {transform_indices = @transform_3, window_bounds = array<i64: 128, 128>}, {transform_indices = @transform_4, window_bounds = array<i64: 128, 128>}]} {
    %c0 = arith.constant 0 : index
    %c0_0 = arith.constant 0 : index
    %0 = vector.load %arg1[%c0, %c0_0] : memref<128x128xf32, #tpu.memory_space<vmem>>, vector<128x128xf32>
    %c0_1 = arith.constant 0 : index
    %c0_2 = arith.constant 0 : index
    %1 = vector.load %arg2[%c0_1, %c0_2] : memref<256x128xf32, #tpu.memory_space<vmem>>, vector<256x128xf32>
    %c0_3 = arith.constant 0 : index
    %c0_4 = arith.constant 0 : index
    %2 = vector.load %arg3[%c0_3, %c0_4] : memref<128x256xf32, #tpu.memory_space<vmem>>, vector<128x256xf32>
    %cst = arith.constant dense<0.000000e+00> : vector<256x128xf32>
    %3 = tpu.matmul %1, %0, %cst {dimension_numbers = #tpu.dot_dimension_numbers<[1], [0], [0], [1], [0, 0, 1, 1], [], []>} : vector<256x128xf32>, vector<128x128xf32>, vector<256x128xf32> -> vector<256x128xf32>
    %cst_5 = arith.constant dense<0.000000e+00> : vector<256x256xf32>
    %4 = tpu.matmul %3, %2, %cst_5 {dimension_numbers = #tpu.dot_dimension_numbers<[1], [0], [0], [1], [0, 0, 1, 1], [], []>} : vector<256x128xf32>, vector<128x256xf32>, vector<256x256xf32> -> vector<256x256xf32>
    %5 = vector.extract_strided_slice %4 {offsets = [0, 0], sizes = [128, 128], strides = [1, 1]} : vector<256x256xf32> to vector<128x128xf32>
    %6 = vector.extract_strided_slice %4 {offsets = [128, 128], sizes = [128, 128], strides = [1, 1]} : vector<256x256xf32> to vector<128x128xf32>
    %7 = arith.subf %5, %6 : vector<128x128xf32>
    %c0_6 = arith.constant 0 : index
    %c0_7 = arith.constant 0 : index
    %8 = vector.load %arg4[%c0_6, %c0_7] : memref<128x128xf32, #tpu.memory_space<vmem>>, vector<128x128xf32>
    tpu.vector_store %arg4[%c0_6, %c0_7], %7 {strides = array<i32>} : memref<128x128xf32, #tpu.memory_space<vmem>>, vector<128x128xf32>,
    %9 = vector.extract_strided_slice %4 {offsets = [0, 128], sizes = [128, 128], strides = [1, 1]} : vector<256x256xf32> to vector<128x128xf32>
    %10 = vector.extract_strided_slice %4 {offsets = [128, 0], sizes = [128, 128], strides = [1, 1]} : vector<256x256xf32> to vector<128x128xf32>
    %11 = arith.addf %9, %10 : vector<128x128xf32>
    %c0_8 = arith.constant 0 : index
    %c0_9 = arith.constant 0 : index
    %12 = vector.load %arg5[%c0_8, %c0_9] : memref<128x128xf32, #tpu.memory_space<vmem>>, vector<128x128xf32>
    tpu.vector_store %arg5[%c0_8, %c0_9], %11 {strides = array<i32>} : memref<128x128xf32, #tpu.memory_space<vmem>>, vector<128x128xf32>,
    return
  }
  func.func @transform_0(%arg0: i32) -> (i32, i32) {
    %c0_i32 = arith.constant 0 : i32
    %c0_i32_0 = arith.constant 0 : i32
    return %c0_i32, %arg0 : i32, i32
  }
  func.func @transform_1(%arg0: i32) -> (i32, i32) {
    %c0_i32 = arith.constant 0 : i32
    %c0_i32_0 = arith.constant 0 : i32
    %c0_i32_1 = arith.constant 0 : i32
    return %c0_i32, %c0_i32_0 : i32, i32
  }
  func.func @transform_2(%arg0: i32) -> (i32, i32) {
    %c0_i32 = arith.constant 0 : i32
    %c0_i32_0 = arith.constant 0 : i32
    %c0_i32_1 = arith.constant 0 : i32
    return %c0_i32, %c0_i32_0 : i32, i32
  }
  func.func @transform_3(%arg0: i32) -> (i32, i32) {
    %c0_i32 = arith.constant 0 : i32
    %c0_i32_0 = arith.constant 0 : i32
    return %c0_i32, %arg0 : i32, i32
  }
  func.func @transform_4(%arg0: i32) -> (i32, i32) {
    %c0_i32 = arith.constant 0 : i32
    %c0_i32_0 = arith.constant 0 : i32
    return %c0_i32, %arg0 : i32, i32
  }
}

</mosaic_0001>

<llo_original>
// kernel: tpu_custom_call.1
$region0: #{tpu_custom_call.1}
  #allocation0 [shape = 'u32[]', space=smem, size = 0x4, offset = 0x4, fixed_abs, tag = 'smem constant byte address 0x4 - core index']
  #allocation1 [shape = 'u32[72,128]{1,0:T(1,128)}', space=vmem, size = 0x9000, scoped, tag = 'internal scratch']
  %s0 = inlined_call_operand.hbm [shape: f32[128,128], index: 0, kind: input, shape index: {}]
  %s1 = inlined_call_operand.hbm [shape: f32[256,128], index: 1, kind: input, shape index: {}]
  %s2 = inlined_call_operand.hbm [shape: f32[128,256], index: 2, kind: input, shape index: {}]
  %s3 = inlined_call_operand.hbm [shape: f32[128,128], index: 3, kind: output, shape index: {0}]
  %s4 = inlined_call_operand.hbm [shape: f32[128,128], index: 4, kind: output, shape index: {1}]
  %5 = xla_tuple %s3, %s4
  %s6 = sld [smem:[#allocation0]]
  $region42: #{tpu_custom_call.1} parent=0
    _
  %s8 = ssub.s32 1, %s6
  %s9 = scalar_select 0, %s8, %s6
  $region1: #{tpu_custom_call.1} parent=0
    #allocation2 [shape = 'u8[65536]{0}', space=vmem, size = 0x10000, scoped, tag = 'input window, operand 0, single buffered']
    #allocation3 [shape = 's32[1]{0}', space=sflag, size = 0x4, scoped, tag = 'scoped memory for tpu_custom_call.1']
    #allocation4 [shape = 's32[1]{0}', space=sflag, size = 0x4, scoped, tag = 'scoped memory for tpu_custom_call.1']
    #allocation5 [shape = 'u8[131072]{0}', space=vmem, size = 0x20000, scoped, tag = 'input window, operand 1, single buffered']
    #allocation6 [shape = 's32[1]{0}', space=sflag, size = 0x4, scoped, tag = 'scoped memory for tpu_custom_call.1']
    #allocation7 [shape = 'u8[131072]{0}', space=vmem, size = 0x20000, scoped, tag = 'input window, operand 2, single buffered']
    #allocation8 [shape = 'u8[65536]{0}', space=vmem, size = 0x10000, scoped, tag = 'output window, operand 0, single buffered']
    #allocation9 [shape = 'u8[65536]{0}', space=vmem, size = 0x10000, scoped, tag = 'output window, operand 1, single buffered']
    #allocation10 [shape = 's32[1]{0}', space=sflag, size = 0x4, scoped, tag = 'scoped memory for tpu_custom_call.1']
    %10 = vsyncpa [#allocation3], 0
    %11 = vsyncpa [#allocation6], 0
    %12 = vsyncpa [#allocation4], 0
    %13 = vsyncpa [#allocation10], 0
    // Predicated region
    $region2: #{tpu_custom_call.1} parent=1 // pred_check
      _
    $region3: #{tpu_custom_call.1} parent=1 // pred_check_branch
      %15 = sbr.rel (0) target = $region5
    $region4: #{tpu_custom_call.1} parent=1 // pred_region
      %17 = vsyncadd [#allocation3], 0
      %s18 = sshll.u32 %s0, 4
      %s19 = int_to_ptr.hbm [resolvable:$true] %s18
      %s20 = sshll.u32 [#allocation2], 4
      %s21 = int_to_ptr.vmem [resolvable:$true] %s20
      %26 = dma.hbm_to_vmem [thread:$0]  %s19, 2048, %s21, [#allocation3], 128, 128, 8
    $region5: #{tpu_custom_call.1} parent=1 // pred_fallthru
      _
    // Predicated region
    $region6: #{tpu_custom_call.1} parent=1 // pred_check
      _
    $region7: #{tpu_custom_call.1} parent=1 // pred_check_branch
      %28 = sbr.rel (0) target = $region9
    $region8: #{tpu_custom_call.1} parent=1 // pred_region
      %30 = vsyncadd [#allocation6], 0
      %s31 = sshll.u32 %s1, 4
      %s32 = int_to_ptr.hbm [resolvable:$true] %s31
      %s33 = sshll.u32 [#allocation5], 4
      %s34 = int_to_ptr.vmem [resolvable:$true] %s33
      %39 = dma.hbm_to_vmem [thread:$0]  %s32, 4096, %s34, [#allocation6], 128, 128, 8
    $region9: #{tpu_custom_call.1} parent=1 // pred_fallthru
      _
    // Predicated region
    $region10: #{tpu_custom_call.1} parent=1 // pred_check
      _
    $region11: #{tpu_custom_call.1} parent=1 // pred_check_branch
      %41 = sbr.rel (0) target = $region13
    $region12: #{tpu_custom_call.1} parent=1 // pred_region
      %43 = vsyncadd [#allocation6], 0
      %s44 = sshll.u32 %s2, 4
      %s45 = int_to_ptr.hbm [resolvable:$true] %s44
      %s46 = sshll.u32 [#allocation7], 4
      %s47 = int_to_ptr.vmem [resolvable:$true] %s46
      %52 = dma.hbm_to_vmem [thread:$0]  %s45, 4096, %s47, [#allocation6], 256, 256, 16
    $region13: #{tpu_custom_call.1} parent=1 // pred_fallthru
      _
    // Predicated region
    $region14: #{tpu_custom_call.1} parent=1 // pred_check
      _
    $region15: #{tpu_custom_call.1} parent=1 // pred_check_branch
      %54 = sbr.rel (0) target = $region17
    $region16: #{tpu_custom_call.1} parent=1 // pred_region
      %56 = dma.done [#allocation3], 2048
    $region17: #{tpu_custom_call.1} parent=1 // pred_fallthru
      _
    // Predicated region
    $region18: #{tpu_custom_call.1} parent=1 // pred_check
      _
    $region19: #{tpu_custom_call.1} parent=1 // pred_check_branch
      %58 = sbr.rel (0) target = $region21
    $region20: #{tpu_custom_call.1} parent=1 // pred_region
      %60 = dma.done [#allocation6], 4096
    $region21: #{tpu_custom_call.1} parent=1 // pred_fallthru
      _
    // Predicated region
    $region22: #{tpu_custom_call.1} parent=1 // pred_check
      _
    $region23: #{tpu_custom_call.1} parent=1 // pred_check_branch
      %62 = sbr.rel (0) target = $region25
    $region24: #{tpu_custom_call.1} parent=1 // pred_region
      %64 = dma.done [#allocation6], 4096
    $region25: #{tpu_custom_call.1} parent=1 // pred_fallthru
      _
    %v65 = vld [vmem:[#allocation2] sm:$0xff]
    %v66 = vld [vmem:[#allocation2 + $0x8] sm:$0xff]
    %v67 = vld [vmem:[#allocation2 + $0x10] sm:$0xff]
    %v68 = vld [vmem:[#allocation2 + $0x18] sm:$0xff]
    %v69 = vld [vmem:[#allocation2 + $0x20] sm:$0xff]
    %v70 = vld [vmem:[#allocation2 + $0x28] sm:$0xff]
    %v71 = vld [vmem:[#allocation2 + $0x30] sm:$0xff]
    %v72 = vld [vmem:[#allocation2 + $0x38] sm:$0xff]
    %v73 = vld [vmem:[#allocation2 + $0x40] sm:$0xff]
    %v74 = vld [vmem:[#allocation2 + $0x48] sm:$0xff]
    %v75 = vld [vmem:[#allocation2 + $0x50] sm:$0xff]
    %v76 = vld [vmem:[#allocation2 + $0x58] sm:$0xff]
    %v77 = vld [vmem:[#allocation2 + $0x60] sm:$0xff]
    %v78 = vld [vmem:[#allocation2 + $0x68] sm:$0xff]
    %v79 = vld [vmem:[#allocation2 + $0x70] sm:$0xff]
    %v80 = vld [vmem:[#allocation2 + $0x78] sm:$0xff]
    %v81 = vld [vmem:[#allocation5] sm:$0xff]
    %v82 = vld [vmem:[#allocation5 + $0x8] sm:$0xff]
    %v83 = vld [vmem:[#allocation5 + $0x10] sm:$0xff]
    %v84 = vld [vmem:[#allocation5 + $0x18] sm:$0xff]
    %v85 = vld [vmem:[#allocation5 + $0x20] sm:$0xff]
    %v86 = vld [vmem:[#allocation5 + $0x28] sm:$0xff]
    %v87 = vld [vmem:[#allocation5 + $0x30] sm:$0xff]
    %v88 = vld [vmem:[#allocation5 + $0x38] sm:$0xff]
    %v89 = vld [vmem:[#allocation5 + $0x40] sm:$0xff]
    %v90 = vld [vmem:[#allocation5 + $0x48] sm:$0xff]
    %v91 = vld [vmem:[#allocation5 + $0x50] sm:$0xff]
    %v92 = vld [vmem:[#allocation5 + $0x58] sm:$0xff]
    %v93 = vld [vmem:[#allocation5 + $0x60] sm:$0xff]
    %v94 = vld [vmem:[#allocation5 + $0x68] sm:$0xff]
    %v95 = vld [vmem:[#allocation5 + $0x70] sm:$0xff]
    %v96 = vld [vmem:[#allocation5 + $0x78] sm:$0xff]
    %v97 = vld [vmem:[#allocation5 + $0x80] sm:$0xff]
    %v98 = vld [vmem:[#allocation5 + $0x88] sm:$0xff]
    %v99 = vld [vmem:[#allocation5 + $0x90] sm:$0xff]
    %v100 = vld [vmem:[#allocation5 + $0x98] sm:$0xff]
    %v101 = vld [vmem:[#allocation5 + $0xa0] sm:$0xff]
    %v102 = vld [vmem:[#allocation5 + $0xa8] sm:$0xff]
    %v103 = vld [vmem:[#allocation5 + $0xb0] sm:$0xff]
    %v104 = vld [vmem:[#allocation5 + $0xb8] sm:$0xff]
    %v105 = vld [vmem:[#allocation5 + $0xc0] sm:$0xff]
    %v106 = vld [vmem:[#allocation5 + $0xc8] sm:$0xff]
    %v107 = vld [vmem:[#allocation5 + $0xd0] sm:$0xff]
    %v108 = vld [vmem:[#allocation5 + $0xd8] sm:$0xff]
    %v109 = vld [vmem:[#allocation5 + $0xe0] sm:$0xff]
    %v110 = vld [vmem:[#allocation5 + $0xe8] sm:$0xff]
    %v111 = vld [vmem:[#allocation5 + $0xf0] sm:$0xff]
    %v112 = vld [vmem:[#allocation5 + $0xf8] sm:$0xff]
    %v113 = vld [vmem:[#allocation7] sm:$0xff]
    %v114 = vld [vmem:[#allocation7 + $0x8] sm:$0xff]
    %v115 = vld [vmem:[#allocation7 + $0x10] sm:$0xff]
    %v116 = vld [vmem:[#allocation7 + $0x18] sm:$0xff]
    %v117 = vld [vmem:[#allocation7 + $0x20] sm:$0xff]
    %v118 = vld [vmem:[#allocation7 + $0x28] sm:$0xff]
    %v119 = vld [vmem:[#allocation7 + $0x30] sm:$0xff]
    %v120 = vld [vmem:[#allocation7 + $0x38] sm:$0xff]
    %v121 = vld [vmem:[#allocation7 + $0x40] sm:$0xff]
    %v122 = vld [vmem:[#allocation7 + $0x48] sm:$0xff]
    %v123 = vld [vmem:[#allocation7 + $0x50] sm:$0xff]
    %v124 = vld [vmem:[#allocation7 + $0x58] sm:$0xff]
    %v125 = vld [vmem:[#allocation7 + $0x60] sm:$0xff]
    %v126 = vld [vmem:[#allocation7 + $0x68] sm:$0xff]
    %v127 = vld [vmem:[#allocation7 + $0x70] sm:$0xff]
    %v128 = vld [vmem:[#allocation7 + $0x78] sm:$0xff]
    %v129 = vld [vmem:[#allocation7 + $0x80] sm:$0xff]
    %v130 = vld [vmem:[#allocation7 + $0x88] sm:$0xff]
    %v131 = vld [vmem:[#allocation7 + $0x90] sm:$0xff]
    %v132 = vld [vmem:[#allocation7 + $0x98] sm:$0xff]
    %v133 = vld [vmem:[#allocation7 + $0xa0] sm:$0xff]
    %v134 = vld [vmem:[#allocation7 + $0xa8] sm:$0xff]
    %v135 = vld [vmem:[#allocation7 + $0xb0] sm:$0xff]
    %v136 = vld [vmem:[#allocation7 + $0xb8] sm:$0xff]
    %v137 = vld [vmem:[#allocation7 + $0xc0] sm:$0xff]
    %v138 = vld [vmem:[#allocation7 + $0xc8] sm:$0xff]
    %v139 = vld [vmem:[#allocation7 + $0xd0] sm:$0xff]
    %v140 = vld [vmem:[#allocation7 + $0xd8] sm:$0xff]
    %v141 = vld [vmem:[#allocation7 + $0xe0] sm:$0xff]
    %v142 = vld [vmem:[#allocation7 + $0xe8] sm:$0xff]
    %v143 = vld [vmem:[#allocation7 + $0xf0] sm:$0xff]
    %v144 = vld [vmem:[#allocation7 + $0xf8] sm:$0xff]
    %145 = vmatpush.msra.mxu0 %v80
    %146 = vmatpush.msra.mxu0 %v79
    %147 = vmatpush.msra.mxu0 %v78
    %148 = vmatpush.msra.mxu0 %v77
    %149 = vmatpush.msra.mxu0 %v76
    %150 = vmatpush.msra.mxu0 %v75
    %151 = vmatpush.msra.mxu0 %v74
    %152 = vmatpush.msra.mxu0 %v73
    %153 = vmatpush.msra.mxu0 %v72
    %154 = vmatpush.msra.mxu0 %v71
    %155 = vmatpush.msra.mxu0 %v70
    %156 = vmatpush.msra.mxu0 %v69
    %157 = vmatpush.msra.mxu0 %v68
    %158 = vmatpush.msra.mxu0 %v67
    %159 = vmatpush.msra.mxu0 %v66
    %160 = vmatpush.msra.mxu0 %v65
    %161 = vmatmul.f32.gmra.mxu0 %v81
    %v162 = vpop.f32.mrf.mxu0
    %v163 = vadd.f32 0.0, %v162
    %164 = vmatmul.f32.gmra.mxu0 %v82
    %v165 = vpop.f32.mrf.mxu0
    %v166 = vadd.f32 0.0, %v165
    %167 = vmatmul.f32.gmra.mxu0 %v83
    %v168 = vpop.f32.mrf.mxu0
    %v169 = vadd.f32 0.0, %v168
    %170 = vmatmul.f32.gmra.mxu0 %v84
    %v171 = vpop.f32.mrf.mxu0
    %v172 = vadd.f32 0.0, %v171
    %173 = vmatmul.f32.gmra.mxu0 %v85
    %v174 = vpop.f32.mrf.mxu0
    %v175 = vadd.f32 0.0, %v174
    %176 = vmatmul.f32.gmra.mxu0 %v86
    %v177 = vpop.f32.mrf.mxu0
    %v178 = vadd.f32 0.0, %v177
    %179 = vmatmul.f32.gmra.mxu0 %v87
    %v180 = vpop.f32.mrf.mxu0
    %v181 = vadd.f32 0.0, %v180
    %182 = vmatmul.f32.gmra.mxu0 %v88
    %v183 = vpop.f32.mrf.mxu0
    %v184 = vadd.f32 0.0, %v183
    %185 = vmatmul.f32.gmra.mxu0 %v89
    %v186 = vpop.f32.mrf.mxu0
    %v187 = vadd.f32 0.0, %v186
    %188 = vmatmul.f32.gmra.mxu0 %v90
    %v189 = vpop.f32.mrf.mxu0
    %v190 = vadd.f32 0.0, %v189
    %191 = vmatmul.f32.gmra.mxu0 %v91
    %v192 = vpop.f32.mrf.mxu0
    %v193 = vadd.f32 0.0, %v192
    %194 = vmatmul.f32.gmra.mxu0 %v92
    %v195 = vpop.f32.mrf.mxu0
    %v196 = vadd.f32 0.0, %v195
    %197 = vmatmul.f32.gmra.mxu0 %v93
    %v198 = vpop.f32.mrf.mxu0
    %v199 = vadd.f32 0.0, %v198
    %200 = vmatmul.f32.gmra.mxu0 %v94
    %v201 = vpop.f32.mrf.mxu0
    %v202 = vadd.f32 0.0, %v201
    %203 = vmatmul.f32.gmra.mxu0 %v95
    %v204 = vpop.f32.mrf.mxu0
    %v205 = vadd.f32 0.0, %v204
    %206 = vmatmul.f32.gmra.mxu0 %v96
    %v207 = vpop.f32.mrf.mxu0
    %v208 = vadd.f32 0.0, %v207
    %209 = vmatmul.f32.gmra.mxu0 %v97
    %v210 = vpop.f32.mrf.mxu0
    %v211 = vadd.f32 0.0, %v210
    %212 = vmatmul.f32.gmra.mxu0 %v98
    %v213 = vpop.f32.mrf.mxu0
    %v214 = vadd.f32 0.0, %v213
    %215 = vmatmul.f32.gmra.mxu0 %v99
    %v216 = vpop.f32.mrf.mxu0
    %v217 = vadd.f32 0.0, %v216
    %218 = vmatmul.f32.gmra.mxu0 %v100
    %v219 = vpop.f32.mrf.mxu0
    %v220 = vadd.f32 0.0, %v219
    %221 = vmatmul.f32.gmra.mxu0 %v101
    %v222 = vpop.f32.mrf.mxu0
    %v223 = vadd.f32 0.0, %v222
    %224 = vmatmul.f32.gmra.mxu0 %v102
    %v225 = vpop.f32.mrf.mxu0
    %v226 = vadd.f32 0.0, %v225
    %227 = vmatmul.f32.gmra.mxu0 %v103
    %v228 = vpop.f32.mrf.mxu0
    %v229 = vadd.f32 0.0, %v228
    %230 = vmatmul.f32.gmra.mxu0 %v104
    %v231 = vpop.f32.mrf.mxu0
    %v232 = vadd.f32 0.0, %v231
    %233 = vmatmul.f32.gmra.mxu0 %v105
    %v234 = vpop.f32.mrf.mxu0
    %v235 = vadd.f32 0.0, %v234
    %236 = vmatmul.f32.gmra.mxu0 %v106
    %v237 = vpop.f32.mrf.mxu0
    %v238 = vadd.f32 0.0, %v237
    %239 = vmatmul.f32.gmra.mxu0 %v107
    %v240 = vpop.f32.mrf.mxu0
    %v241 = vadd.f32 0.0, %v240
    %242 = vmatmul.f32.gmra.mxu0 %v108
    %v243 = vpop.f32.mrf.mxu0
    %v244 = vadd.f32 0.0, %v243
    %245 = vmatmul.f32.gmra.mxu0 %v109
    %v246 = vpop.f32.mrf.mxu0
    %v247 = vadd.f32 0.0, %v246
    %248 = vmatmul.f32.gmra.mxu0 %v110
    %v249 = vpop.f32.mrf.mxu0
    %v250 = vadd.f32 0.0, %v249
    %251 = vmatmul.f32.gmra.mxu0 %v111
    %v252 = vpop.f32.mrf.mxu0
    %v253 = vadd.f32 0.0, %v252
    %254 = vmatmul.f32.gmra.mxu0 %v112
    %v255 = vpop.f32.mrf.mxu0
    %v256 = vadd.f32 0.0, %v255
    %257 = vdwg.mxu0
    %258 = vmatpush.msra.mxu0 %v143
    %259 = vmatpush.msra.mxu0 %v141
    %260 = vmatpush.msra.mxu0 %v139
    %261 = vmatpush.msra.mxu0 %v137
    %262 = vmatpush.msra.mxu0 %v135
    %263 = vmatpush.msra.mxu0 %v133
    %264 = vmatpush.msra.mxu0 %v131
    %265 = vmatpush.msra.mxu0 %v129
    %266 = vmatpush.msra.mxu0 %v127
    %267 = vmatpush.msra.mxu0 %v125
    %268 = vmatpush.msra.mxu0 %v123
    %269 = vmatpush.msra.mxu0 %v121
    %270 = vmatpush.msra.mxu0 %v119
    %271 = vmatpush.msra.mxu0 %v117
    %272 = vmatpush.msra.mxu0 %v115
    %273 = vmatpush.msra.mxu0 %v113
    %274 = vmatmul.f32.gmra.mxu0 %v163
    %v275 = vpop.f32.mrf.mxu0
    %v276 = vadd.f32 0.0, %v275
    %277 = vmatmul.f32.gmra.mxu0 %v166
    %v278 = vpop.f32.mrf.mxu0
    %v279 = vadd.f32 0.0, %v278
    %280 = vmatmul.f32.gmra.mxu0 %v169
    %v281 = vpop.f32.mrf.mxu0
    %v282 = vadd.f32 0.0, %v281
    %283 = vmatmul.f32.gmra.mxu0 %v172
    %v284 = vpop.f32.mrf.mxu0
    %v285 = vadd.f32 0.0, %v284
    %286 = vmatmul.f32.gmra.mxu0 %v175
    %v287 = vpop.f32.mrf.mxu0
    %v288 = vadd.f32 0.0, %v287
    %289 = vmatmul.f32.gmra.mxu0 %v178
    %v290 = vpop.f32.mrf.mxu0
    %v291 = vadd.f32 0.0, %v290
    %292 = vmatmul.f32.gmra.mxu0 %v181
    %v293 = vpop.f32.mrf.mxu0
    %v294 = vadd.f32 0.0, %v293
    %295 = vmatmul.f32.gmra.mxu0 %v184
    %v296 = vpop.f32.mrf.mxu0
    %v297 = vadd.f32 0.0, %v296
    %298 = vmatmul.f32.gmra.mxu0 %v187
    %v299 = vpop.f32.mrf.mxu0
    %v300 = vadd.f32 0.0, %v299
    %301 = vmatmul.f32.gmra.mxu0 %v190
    %v302 = vpop.f32.mrf.mxu0
    %v303 = vadd.f32 0.0, %v302
    %304 = vmatmul.f32.gmra.mxu0 %v193
    %v305 = vpop.f32.mrf.mxu0
    %v306 = vadd.f32 0.0, %v305
    %307 = vmatmul.f32.gmra.mxu0 %v196
    %v308 = vpop.f32.mrf.mxu0
    %v309 = vadd.f32 0.0, %v308
    %310 = vmatmul.f32.gmra.mxu0 %v199
    %v311 = vpop.f32.mrf.mxu0
    %v312 = vadd.f32 0.0, %v311
    %313 = vmatmul.f32.gmra.mxu0 %v202
    %v314 = vpop.f32.mrf.mxu0
    %v315 = vadd.f32 0.0, %v314
    %316 = vmatmul.f32.gmra.mxu0 %v205
    %v317 = vpop.f32.mrf.mxu0
    %v318 = vadd.f32 0.0, %v317
    %319 = vmatmul.f32.gmra.mxu0 %v208
    %v320 = vpop.f32.mrf.mxu0
    %v321 = vadd.f32 0.0, %v320
    %322 = vmatmul.f32.gmra.mxu0 %v211
    %v323 = vpop.f32.mrf.mxu0
    %v324 = vadd.f32 0.0, %v323
    %325 = vmatmul.f32.gmra.mxu0 %v214
    %v326 = vpop.f32.mrf.mxu0
    %v327 = vadd.f32 0.0, %v326
    %328 = vmatmul.f32.gmra.mxu0 %v217
    %v329 = vpop.f32.mrf.mxu0
    %v330 = vadd.f32 0.0, %v329
    %331 = vmatmul.f32.gmra.mxu0 %v220
    %v332 = vpop.f32.mrf.mxu0
    %v333 = vadd.f32 0.0, %v332
    %334 = vmatmul.f32.gmra.mxu0 %v223
    %v335 = vpop.f32.mrf.mxu0
    %v336 = vadd.f32 0.0, %v335
    %337 = vmatmul.f32.gmra.mxu0 %v226
    %v338 = vpop.f32.mrf.mxu0
    %v339 = vadd.f32 0.0, %v338
    %340 = vmatmul.f32.gmra.mxu0 %v229
    %v341 = vpop.f32.mrf.mxu0
    %v342 = vadd.f32 0.0, %v341
    %343 = vmatmul.f32.gmra.mxu0 %v232
    %v344 = vpop.f32.mrf.mxu0
    %v345 = vadd.f32 0.0, %v344
    %346 = vmatmul.f32.gmra.mxu0 %v235
    %v347 = vpop.f32.mrf.mxu0
    %v348 = vadd.f32 0.0, %v347
    %349 = vmatmul.f32.gmra.mxu0 %v238
    %v350 = vpop.f32.mrf.mxu0
    %v351 = vadd.f32 0.0, %v350
    %352 = vmatmul.f32.gmra.mxu0 %v241
    %v353 = vpop.f32.mrf.mxu0
    %v354 = vadd.f32 0.0, %v353
    %355 = vmatmul.f32.gmra.mxu0 %v244
    %v356 = vpop.f32.mrf.mxu0
    %v357 = vadd.f32 0.0, %v356
    %358 = vmatmul.f32.gmra.mxu0 %v247
    %v359 = vpop.f32.mrf.mxu0
    %v360 = vadd.f32 0.0, %v359
    %361 = vmatmul.f32.gmra.mxu0 %v250
    %v362 = vpop.f32.mrf.mxu0
    %v363 = vadd.f32 0.0, %v362
    %364 = vmatmul.f32.gmra.mxu0 %v253
    %v365 = vpop.f32.mrf.mxu0
    %v366 = vadd.f32 0.0, %v365
    %367 = vmatmul.f32.gmra.mxu0 %v256
    %v368 = vpop.f32.mrf.mxu0
    %v369 = vadd.f32 0.0, %v368
    %370 = vdwg.mxu0
    %371 = vmatpush.msra.mxu0 %v144
    %372 = vmatpush.msra.mxu0 %v142
    %373 = vmatpush.msra.mxu0 %v140
    %374 = vmatpush.msra.mxu0 %v138
    %375 = vmatpush.msra.mxu0 %v136
    %376 = vmatpush.msra.mxu0 %v134
    %377 = vmatpush.msra.mxu0 %v132
    %378 = vmatpush.msra.mxu0 %v130
    %379 = vmatpush.msra.mxu0 %v128
    %380 = vmatpush.msra.mxu0 %v126
    %381 = vmatpush.msra.mxu0 %v124
    %382 = vmatpush.msra.mxu0 %v122
    %383 = vmatpush.msra.mxu0 %v120
    %384 = vmatpush.msra.mxu0 %v118
    %385 = vmatpush.msra.mxu0 %v116
    %386 = vmatpush.msra.mxu0 %v114
    %387 = vmatmul.f32.gmra.mxu0 %v163
    %v388 = vpop.f32.mrf.mxu0
    %v389 = vadd.f32 0.0, %v388
    %390 = vmatmul.f32.gmra.mxu0 %v166
    %v391 = vpop.f32.mrf.mxu0
    %v392 = vadd.f32 0.0, %v391
    %393 = vmatmul.f32.gmra.mxu0 %v169
    %v394 = vpop.f32.mrf.mxu0
    %v395 = vadd.f32 0.0, %v394
    %396 = vmatmul.f32.gmra.mxu0 %v172
    %v397 = vpop.f32.mrf.mxu0
    %v398 = vadd.f32 0.0, %v397
    %399 = vmatmul.f32.gmra.mxu0 %v175
    %v400 = vpop.f32.mrf.mxu0
    %v401 = vadd.f32 0.0, %v400
    %402 = vmatmul.f32.gmra.mxu0 %v178
    %v403 = vpop.f32.mrf.mxu0
    %v404 = vadd.f32 0.0, %v403
    %405 = vmatmul.f32.gmra.mxu0 %v181
    %v406 = vpop.f32.mrf.mxu0
    %v407 = vadd.f32 0.0, %v406
    %408 = vmatmul.f32.gmra.mxu0 %v184
    %v409 = vpop.f32.mrf.mxu0
    %v410 = vadd.f32 0.0, %v409
    %411 = vmatmul.f32.gmra.mxu0 %v187
    %v412 = vpop.f32.mrf.mxu0
    %v413 = vadd.f32 0.0, %v412
    %414 = vmatmul.f32.gmra.mxu0 %v190
    %v415 = vpop.f32.mrf.mxu0
    %v416 = vadd.f32 0.0, %v415
    %417 = vmatmul.f32.gmra.mxu0 %v193
    %v418 = vpop.f32.mrf.mxu0
    %v419 = vadd.f32 0.0, %v418
    %420 = vmatmul.f32.gmra.mxu0 %v196
    %v421 = vpop.f32.mrf.mxu0
    %v422 = vadd.f32 0.0, %v421
    %423 = vmatmul.f32.gmra.mxu0 %v199
    %v424 = vpop.f32.mrf.mxu0
    %v425 = vadd.f32 0.0, %v424
    %426 = vmatmul.f32.gmra.mxu0 %v202
    %v427 = vpop.f32.mrf.mxu0
    %v428 = vadd.f32 0.0, %v427
    %429 = vmatmul.f32.gmra.mxu0 %v205
    %v430 = vpop.f32.mrf.mxu0
    %v431 = vadd.f32 0.0, %v430
    %432 = vmatmul.f32.gmra.mxu0 %v208
    %v433 = vpop.f32.mrf.mxu0
    %v434 = vadd.f32 0.0, %v433
    %435 = vmatmul.f32.gmra.mxu0 %v211
    %v436 = vpop.f32.mrf.mxu0
    %v437 = vadd.f32 0.0, %v436
    %438 = vmatmul.f32.gmra.mxu0 %v214
    %v439 = vpop.f32.mrf.mxu0
    %v440 = vadd.f32 0.0, %v439
    %441 = vmatmul.f32.gmra.mxu0 %v217
    %v442 = vpop.f32.mrf.mxu0
    %v443 = vadd.f32 0.0, %v442
    %444 = vmatmul.f32.gmra.mxu0 %v220
    %v445 = vpop.f32.mrf.mxu0
    %v446 = vadd.f32 0.0, %v445
    %447 = vmatmul.f32.gmra.mxu0 %v223
    %v448 = vpop.f32.mrf.mxu0
    %v449 = vadd.f32 0.0, %v448
    %450 = vmatmul.f32.gmra.mxu0 %v226
    %v451 = vpop.f32.mrf.mxu0
    %v452 = vadd.f32 0.0, %v451
    %453 = vmatmul.f32.gmra.mxu0 %v229
    %v454 = vpop.f32.mrf.mxu0
    %v455 = vadd.f32 0.0, %v454
    %456 = vmatmul.f32.gmra.mxu0 %v232
    %v457 = vpop.f32.mrf.mxu0
    %v458 = vadd.f32 0.0, %v457
    %459 = vmatmul.f32.gmra.mxu0 %v235
    %v460 = vpop.f32.mrf.mxu0
    %v461 = vadd.f32 0.0, %v460
    %462 = vmatmul.f32.gmra.mxu0 %v238
    %v463 = vpop.f32.mrf.mxu0
    %v464 = vadd.f32 0.0, %v463
    %465 = vmatmul.f32.gmra.mxu0 %v241
    %v466 = vpop.f32.mrf.mxu0
    %v467 = vadd.f32 0.0, %v466
    %468 = vmatmul.f32.gmra.mxu0 %v244
    %v469 = vpop.f32.mrf.mxu0
    %v470 = vadd.f32 0.0, %v469
    %471 = vmatmul.f32.gmra.mxu0 %v247
    %v472 = vpop.f32.mrf.mxu0
    %v473 = vadd.f32 0.0, %v472
    %474 = vmatmul.f32.gmra.mxu0 %v250
    %v475 = vpop.f32.mrf.mxu0
    %v476 = vadd.f32 0.0, %v475
    %477 = vmatmul.f32.gmra.mxu0 %v253
    %v478 = vpop.f32.mrf.mxu0
    %v479 = vadd.f32 0.0, %v478
    %480 = vmatmul.f32.gmra.mxu0 %v256
    %v481 = vpop.f32.mrf.mxu0
    %v482 = vadd.f32 0.0, %v481
    %483 = vdwg.mxu0
    %v484 = vsub.f32 %v276, %v437
    %v485 = vsub.f32 %v279, %v440
    %v486 = vsub.f32 %v282, %v443
    %v487 = vsub.f32 %v285, %v446
    %v488 = vsub.f32 %v288, %v449
    %v489 = vsub.f32 %v291, %v452
    %v490 = vsub.f32 %v294, %v455
    %v491 = vsub.f32 %v297, %v458
    %v492 = vsub.f32 %v300, %v461
    %v493 = vsub.f32 %v303, %v464
    %v494 = vsub.f32 %v306, %v467
    %v495 = vsub.f32 %v309, %v470
    %v496 = vsub.f32 %v312, %v473
    %v497 = vsub.f32 %v315, %v476
    %v498 = vsub.f32 %v318, %v479
    %v499 = vsub.f32 %v321, %v482
    %500 = vst [vmem:[#allocation8] sm:$0xff] %v484
    %501 = vst [vmem:[#allocation8 + $0x8] sm:$0xff] %v485
    %502 = vst [vmem:[#allocation8 + $0x10] sm:$0xff] %v486
    %503 = vst [vmem:[#allocation8 + $0x18] sm:$0xff] %v487
    %504 = vst [vmem:[#allocation8 + $0x20] sm:$0xff] %v488
    %505 = vst [vmem:[#allocation8 + $0x28] sm:$0xff] %v489
    %506 = vst [vmem:[#allocation8 + $0x30] sm:$0xff] %v490
    %507 = vst [vmem:[#allocation8 + $0x38] sm:$0xff] %v491
    %508 = vst [vmem:[#allocation8 + $0x40] sm:$0xff] %v492
    %509 = vst [vmem:[#allocation8 + $0x48] sm:$0xff] %v493
    %510 = vst [vmem:[#allocation8 + $0x50] sm:$0xff] %v494
    %511 = vst [vmem:[#allocation8 + $0x58] sm:$0xff] %v495
    %512 = vst [vmem:[#allocation8 + $0x60] sm:$0xff] %v496
    %513 = vst [vmem:[#allocation8 + $0x68] sm:$0xff] %v497
    %514 = vst [vmem:[#allocation8 + $0x70] sm:$0xff] %v498
    %515 = vst [vmem:[#allocation8 + $0x78] sm:$0xff] %v499
    %v516 = vadd.f32 %v389, %v324
    %v517 = vadd.f32 %v392, %v327
    %v518 = vadd.f32 %v395, %v330
    %v519 = vadd.f32 %v398, %v333
    %v520 = vadd.f32 %v401, %v336
    %v521 = vadd.f32 %v404, %v339
    %v522 = vadd.f32 %v407, %v342
    %v523 = vadd.f32 %v410, %v345
    %v524 = vadd.f32 %v413, %v348
    %v525 = vadd.f32 %v416, %v351
    %v526 = vadd.f32 %v419, %v354
    %v527 = vadd.f32 %v422, %v357
    %v528 = vadd.f32 %v425, %v360
    %v529 = vadd.f32 %v428, %v363
    %v530 = vadd.f32 %v431, %v366
    %v531 = vadd.f32 %v434, %v369
    %532 = vst [vmem:[#allocation9] sm:$0xff] %v516
    %533 = vst [vmem:[#allocation9 + $0x8] sm:$0xff] %v517
    %534 = vst [vmem:[#allocation9 + $0x10] sm:$0xff] %v518
    %535 = vst [vmem:[#allocation9 + $0x18] sm:$0xff] %v519
    %536 = vst [vmem:[#allocation9 + $0x20] sm:$0xff] %v520
    %537 = vst [vmem:[#allocation9 + $0x28] sm:$0xff] %v521
    %538 = vst [vmem:[#allocation9 + $0x30] sm:$0xff] %v522
    %539 = vst [vmem:[#allocation9 + $0x38] sm:$0xff] %v523
    %540 = vst [vmem:[#allocation9 + $0x40] sm:$0xff] %v524
    %541 = vst [vmem:[#allocation9 + $0x48] sm:$0xff] %v525
    %542 = vst [vmem:[#allocation9 + $0x50] sm:$0xff] %v526
    %543 = vst [vmem:[#allocation9 + $0x58] sm:$0xff] %v527
    %544 = vst [vmem:[#allocation9 + $0x60] sm:$0xff] %v528
    %545 = vst [vmem:[#allocation9 + $0x68] sm:$0xff] %v529
    %546 = vst [vmem:[#allocation9 + $0x70] sm:$0xff] %v530
    %547 = vst [vmem:[#allocation9 + $0x78] sm:$0xff] %v531
    // Predicated region
    $region26: #{tpu_custom_call.1} parent=1 // pred_check
      _
    $region27: #{tpu_custom_call.1} parent=1 // pred_check_branch
      %549 = sbr.rel (0) target = $region29
    $region28: #{tpu_custom_call.1} parent=1 // pred_region
      %551 = vsyncadd [#allocation4], 0
      %s552 = sshll.u32 [#allocation8], 4
      %s553 = int_to_ptr.vmem [resolvable:$true] %s552
      %s554 = sshll.u32 %s3, 4
      %s555 = int_to_ptr.hbm [resolvable:$true] %s554
      %560 = dma.vmem_to_hbm [thread:$0]  %s553, 2048, %s555, [#allocation4], 128, 128, 8
    $region29: #{tpu_custom_call.1} parent=1 // pred_fallthru
      _
    // Predicated region
    $region30: #{tpu_custom_call.1} parent=1 // pred_check
      _
    $region31: #{tpu_custom_call.1} parent=1 // pred_check_branch
      %562 = sbr.rel (0) target = $region33
    $region32: #{tpu_custom_call.1} parent=1 // pred_region
      %564 = vsyncadd [#allocation10], 0
      %s565 = sshll.u32 [#allocation9], 4
      %s566 = int_to_ptr.vmem [resolvable:$true] %s565
      %s567 = sshll.u32 %s4, 4
      %s568 = int_to_ptr.hbm [resolvable:$true] %s567
      %573 = dma.vmem_to_hbm [thread:$0]  %s566, 2048, %s568, [#allocation10], 128, 128, 8
    $region33: #{tpu_custom_call.1} parent=1 // pred_fallthru
      _
    // Predicated region
    $region34: #{tpu_custom_call.1} parent=1 // pred_check
      _
    $region35: #{tpu_custom_call.1} parent=1 // pred_check_branch
      %575 = sbr.rel (0) target = $region37
    $region36: #{tpu_custom_call.1} parent=1 // pred_region
      %577 = dma.done [#allocation4], 2048
    $region37: #{tpu_custom_call.1} parent=1 // pred_fallthru
      _
    // Predicated region
    $region38: #{tpu_custom_call.1} parent=1 // pred_check
      _
    $region39: #{tpu_custom_call.1} parent=1 // pred_check_branch
      %579 = sbr.rel (0) target = $region41
    $region40: #{tpu_custom_call.1} parent=1 // pred_region
      %581 = dma.done [#allocation10], 2048
    $region41: #{tpu_custom_call.1} parent=1 // pred_fallthru
      _
    %582 = vsyncpa [#allocation3], 1
    %583 = vsyncpa [#allocation6], 1
    %584 = vsyncpa [#allocation4], 1
    %585 = vsyncpa [#allocation10], 1

</llo_original>
